<compile_context>
chip_gen: v7x
topology: tpu7x:2x2x1
jax: 0.10.0
libtpu: 0.0.40
codegen_flags: <defaults>
</compile_context>

<pallas_src>
import functools
import math

import jax
import jax.numpy as jnp
from jax.experimental import pallas as pl
from jax.experimental.pallas import tpu as pltpu


def _memory_unit_kernel(*refs, shrink_thres, has_mask):
    if has_mask:
        x_ref, w_ref, mask_ref, out_ref, att_ref = refs
    else:
        x_ref, w_ref, out_ref, att_ref = refs
        mask_ref = None

    # In-kernel cast of the row tile to bf16 (VALU, hidden under the MXU).
    x = x_ref[...].astype(jnp.bfloat16)   # (TN, Fp)
    w = w_ref[...]                        # (Mp, Fp) bf16, VMEM-resident

    # att_weight = x @ w.T : contract on the feature dim without transposing w.
    logits = jax.lax.dot_general(
        x, w,
        dimension_numbers=(((1,), (1,)), ((), ())),
        preferred_element_type=jnp.float32,
    )  # (TN, Mp) f32

    # Softmax over the memory dimension (dim=1). Padded memory columns have
    # logits exactly 0 (zero-padded weight rows); they are removed from the
    # normalization by the precomputed 0/1 mask multiplied into exp().
    m = jnp.max(logits, axis=-1, keepdims=True)
    e = jnp.exp(logits - m)
    if mask_ref is not None:
        e = e * mask_ref[...]             # (1, Mp) broadcast, zeroes pad cols
    denom = jnp.sum(e, axis=-1, keepdims=True)
    att = e * (1.0 / denom)               # exact per-row reciprocal (TN divides)

    if shrink_thres > 0.0:
        # Forward-equivalent hard_shrink_relu: relu(a-l)*a/(|a-l|+eps) == a for
        # a > l, 0 otherwise (within f32 rounding).
        att = jnp.where(att > shrink_thres, att, 0.0)
        # F.normalize(att, p=1, dim=1); att >= 0 so no abs needed.
        l1 = jnp.sum(att, axis=-1, keepdims=True)
        att = att * (1.0 / jnp.maximum(l1, 1e-12))

    # output = att @ w : (TN, Fp), bf16 MXU operands, f32 accumulation.
    out = jax.lax.dot_general(
        att.astype(w.dtype), w,
        dimension_numbers=(((1,), (0,)), ((), ())),
        preferred_element_type=jnp.float32,
    )

    out_ref[...] = out.astype(out_ref.dtype)
    att_ref[...] = att.astype(att_ref.dtype)


def _round_up(v, m):
    return ((v + m - 1) // m) * m


def memory_unit_forward(x, weight, shrink_thres=0.0025, row_tile=256,
                        target_row_steps=8, att_dtype=None):
    """x: (N, fea_dim), weight: (mem_dim, fea_dim) -> {'output', 'att'}."""
    N, F = x.shape
    M, F2 = weight.shape
    assert F == F2, "feature dims must match"

    out_dtype = x.dtype
    att_dtype = out_dtype if att_dtype is None else jnp.dtype(att_dtype)

    # Lane-dense padding: feature / memory dims to multiples of 128.
    Fp = _round_up(F, 128)
    Mp = _round_up(M, 128)

    # Row tile: aim for >= target_row_steps grid steps (pipelining + v7x
    # megacore), multiple of 8 (sublane), capped at row_tile.
    TN = _round_up(pl.cdiv(N, target_row_steps), 8)
    TN = max(8, min(int(row_tile), TN))
    Np = _round_up(N, TN)

    # x stays in its native dtype (bf16 cast happens in-kernel); pad only if
    # the shape actually needs it.
    xp = x if (Np, Fp) == (N, F) else jnp.pad(x, ((0, Np - N), (0, Fp - F)))
    # Weight is DMA'd once and held resident -> cast to bf16 up front (halves
    # its DMA and VMEM residency); pad in the same XLA pass.
    wb = weight.astype(jnp.bfloat16)
    if (Mp, Fp) != (M, F):
        wb = jnp.pad(wb, ((0, Mp - M), (0, Fp - F)))

    has_mask = Mp != M
    inputs = [xp, wb]
    in_specs = [
        pl.BlockSpec((TN, Fp), lambda i: (i, 0)),                 # row tile of x
        pl.BlockSpec(memory_space=pltpu.MemorySpace.VMEM),        # resident weight (1 copy)
    ]
    if has_mask:
        col_mask = (jnp.arange(Mp, dtype=jnp.int32) < M).astype(jnp.float32)
        inputs.append(col_mask.reshape(1, Mp))
        in_specs.append(pl.BlockSpec(memory_space=pltpu.MemorySpace.VMEM))

    kernel = functools.partial(
        _memory_unit_kernel, shrink_thres=float(shrink_thres), has_mask=has_mask
    )

    # VMEM budget: real footprint + headroom, capped at 48 MiB so v7x's 64 MiB
    # physical VMEM keeps room for compiler scratch/spills.
    x_b = jnp.dtype(x.dtype).itemsize
    out_b = jnp.dtype(out_dtype).itemsize
    att_b = jnp.dtype(att_dtype).itemsize
    footprint = (
        Mp * Fp * 2                       # resident bf16 weight (single copy)
        + Mp * 4                          # column mask
        + 2 * TN * Fp * (x_b + out_b)     # double-buffered x / out row tiles
        + 2 * TN * Mp * att_b             # double-buffered att row tiles
        + 6 * TN * Mp * 4                 # f32 intermediates + spill headroom
    )
    vmem_limit = int(min(max(footprint, 32 * 1024 * 1024), 48 * 1024 * 1024))

    cost = pl.CostEstimate(
        flops=4 * Np * Mp * Fp,           # two (Np, Mp, Fp) matmuls
        transcendentals=Np * Mp,          # exp
        bytes_accessed=(Np * Fp * x_b + Mp * Fp * 2
                        + Np * Fp * out_b + Np * Mp * att_b),
    )

    out, att = pl.pallas_call(
        kernel,
        out_shape=(
            jax.ShapeDtypeStruct((Np, Fp), out_dtype),
            jax.ShapeDtypeStruct((Np, Mp), att_dtype),
        ),
        grid_spec=pltpu.PrefetchScalarGridSpec(
            num_scalar_prefetch=0,
            grid=(Np // TN,),
            in_specs=in_specs,
            out_specs=[
                pl.BlockSpec((TN, Fp), lambda i: (i, 0)),   # output row tile
                pl.BlockSpec((TN, Mp), lambda i: (i, 0)),   # attention row tile
            ],
        ),
        compiler_params=pltpu.CompilerParams(
            dimension_semantics=("parallel",),              # megacore on v7x
            vmem_limit_bytes=vmem_limit,
        ),
        cost_estimate=cost,
    )(*inputs)

    # Slice the padding back off.
    return {"output": out[:N, :F], "att": att[:N, :M]}


def init_memory_weight(key, mem_dim, fea_dim):
    # Matches reset_parameters: uniform(-stdv, stdv), stdv = 1/sqrt(fea_dim)
    stdv = 1.0 / math.sqrt(fea_dim)
    return jax.random.uniform(
        key, (mem_dim, fea_dim), dtype=jnp.float32, minval=-stdv, maxval=stdv
    )


def _reference(x, w, shrink_thres):
    """Pure-JAX f32 reference matching the PyTorch module forward."""
    logits = x @ w.T
    att = jax.nn.softmax(logits, axis=1)
    if shrink_thres > 0:
        att = jax.nn.relu(att - shrink_thres) * att / (
            jnp.abs(att - shrink_thres) + 1e-12)
        att = att / jnp.maximum(jnp.sum(jnp.abs(att), axis=1, keepdims=True), 1e-12)
    return att @ w, att


if __name__ == "__main__":
    key = jax.random.PRNGKey(0)
    k_x, k_w = jax.random.split(key)

    # Small shapes consistent with the module: N flattened feature vectors,
    # fea_dim channels, mem_dim memory slots (non-multiple of 128 to exercise
    # the padding / column-mask path; N chosen so the row grid has 4 steps).
    N = 32          # e.g. B=2, H=W=4 flattened
    fea_dim = 32
    mem_dim = 100

    x = jax.random.normal(k_x, (N, fea_dim), dtype=jnp.float32)
    weight = init_memory_weight(k_w, mem_dim, fea_dim)

    result = memory_unit_forward(x, weight, shrink_thres=0.0025)
    jax.block_until_ready(result["output"])
    jax.block_until_ready(result["att"])

    # Sanity checks: shapes, L1-normalized attention rows, match vs f32 reference.
    assert result["output"].shape == (N, fea_dim)
    assert result["att"].shape == (N, mem_dim)

    att_f32 = result["att"].astype(jnp.float32)
    row_sums = jnp.sum(jnp.abs(att_f32), axis=-1)
    assert bool(jnp.all(jnp.abs(row_sums - 1.0) < 1e-2)), "att rows not L1-normalized"

    ref_out, ref_att = _reference(x, weight, 0.0025)
    out_err = jnp.max(jnp.abs(result["output"].astype(jnp.float32) - ref_out))
    att_err = jnp.max(jnp.abs(att_f32 - ref_att))
    assert bool(out_err < 5e-2), f"output mismatch vs reference: {out_err}"
    assert bool(att_err < 5e-2), f"att mismatch vs reference: {att_err}"

    print("KERNEL_OK")
</pallas_src>

<mosaic_0001>
module attributes {stable_mosaic.version = 11 : i64} {
  func.func @_memory_unit_kernel(%arg0: i32, %arg1: memref<8x128xf32, #tpu.memory_space<vmem>>, %arg2: memref<128x128xbf16, #tpu.memory_space<vmem>>, %arg3: memref<1x128xf32, #tpu.memory_space<vmem>>, %arg4: memref<8x128xf32, #tpu.memory_space<vmem>>, %arg5: memref<8x128xf32, #tpu.memory_space<vmem>>) attributes {dimension_semantics = [#tpu.dimension_semantics<parallel>], iteration_bounds = array<i64: 4>, scalar_prefetch = 0 : i64, scratch_operands = 0 : i64, tpu.core_type = #tpu.core_type<tc>, window_params = [{transform_indices = @transform_0, window_bounds = array<i64: 8, 128>}, {pipeline_mode = #tpu.pipeline_mode<synchronous>, transform_indices = @transform_1, window_bounds = array<i64: 128, 128>}, {pipeline_mode = #tpu.pipeline_mode<synchronous>, transform_indices = @transform_2, window_bounds = array<i64: 1, 128>}, {transform_indices = @transform_3, window_bounds = array<i64: 8, 128>}, {transform_indices = @transform_4, window_bounds = array<i64: 8, 128>}]} {
    %c0 = arith.constant 0 : index
    %c0_0 = arith.constant 0 : index
    %0 = vector.load %arg1[%c0, %c0_0] : memref<8x128xf32, #tpu.memory_space<vmem>>, vector<8x128xf32>
    %1 = arith.truncf %0 : vector<8x128xf32> to vector<8x128xbf16>
    %c0_1 = arith.constant 0 : index
    %c0_2 = arith.constant 0 : index
    %2 = vector.load %arg2[%c0_1, %c0_2] : memref<128x128xbf16, #tpu.memory_space<vmem>>, vector<128x128xbf16>
    %cst = arith.constant dense<0.000000e+00> : vector<8x128xf32>
    %3 = tpu.matmul %1, %2, %cst {dimension_numbers = #tpu.dot_dimension_numbers<[1], [1], [0], [0], [0, 0, 1, 0], [], []>} : vector<8x128xbf16>, vector<128x128xbf16>, vector<8x128xf32> -> vector<8x128xf32>
    %cst_3 = arith.constant dense<0xFF800000> : vector<8xf32>
    %4 = vector.multi_reduction <maximumf>, %3, %cst_3 [1] : vector<8x128xf32> to vector<8xf32>
    %5 = vector.shape_cast %4 : vector<8xf32> to vector<8x1xf32>
    %6 = vector.broadcast %5 : vector<8x1xf32> to vector<8x128xf32>
    %7 = arith.subf %3, %6 : vector<8x128xf32>
    %8 = math.exp %7 : vector<8x128xf32>
    %c0_4 = arith.constant 0 : index
    %c0_5 = arith.constant 0 : index
    %9 = vector.load %arg3[%c0_4, %c0_5] : memref<1x128xf32, #tpu.memory_space<vmem>>, vector<1x128xf32>
    %10 = vector.broadcast %9 : vector<1x128xf32> to vector<8x128xf32>
    %11 = arith.mulf %8, %10 : vector<8x128xf32>
    %cst_6 = arith.constant dense<0.000000e+00> : vector<8xf32>
    %12 = vector.multi_reduction <add>, %11, %cst_6 [1] : vector<8x128xf32> to vector<8xf32>
    %13 = vector.shape_cast %12 : vector<8xf32> to vector<8x1xf32>
    %cst_7 = arith.constant 1.000000e+00 : f32
    %14 = vector.broadcast %cst_7 : f32 to vector<8x1xf32>
    %15 = arith.divf %14, %13 : vector<8x1xf32>
    %16 = vector.broadcast %15 : vector<8x1xf32> to vector<8x128xf32>
    %17 = arith.mulf %11, %16 : vector<8x128xf32>
    %cst_8 = arith.constant 2.500000e-03 : f32
    %18 = vector.broadcast %cst_8 : f32 to vector<8x128xf32>
    %19 = arith.cmpf ogt, %17, %18 : vector<8x128xf32>
    %cst_9 = arith.constant 0.000000e+00 : f32
    %20 = vector.broadcast %cst_9 : f32 to vector<8x128xf32>
    %21 = arith.select %19, %17, %20 : vector<8x128xi1>, vector<8x128xf32>
    %cst_10 = arith.constant dense<0.000000e+00> : vector<8xf32>
    %22 = vector.multi_reduction <add>, %21, %cst_10 [1] : vector<8x128xf32> to vector<8xf32>
    %23 = vector.shape_cast %22 : vector<8xf32> to vector<8x1xf32>
    %cst_11 = arith.constant 9.99999996E-13 : f32
    %24 = vector.broadcast %cst_11 : f32 to vector<8x1xf32>
    %25 = arith.maximumf %23, %24 : vector<8x1xf32>
    %cst_12 = arith.constant 1.000000e+00 : f32
    %26 = vector.broadcast %cst_12 : f32 to vector<8x1xf32>
    %27 = arith.divf %26, %25 : vector<8x1xf32>
    %28 = vector.broadcast %27 : vector<8x1xf32> to vector<8x128xf32>
    %29 = arith.mulf %21, %28 : vector<8x128xf32>
    %30 = arith.truncf %29 : vector<8x128xf32> to vector<8x128xbf16>
    %cst_13 = arith.constant dense<0.000000e+00> : vector<8x128xf32>
    %31 = tpu.matmul %30, %2, %cst_13 {dimension_numbers = #tpu.dot_dimension_numbers<[1], [0], [0], [1], [0, 0, 1, 1], [], []>} : vector<8x128xbf16>, vector<128x128xbf16>, vector<8x128xf32> -> vector<8x128xf32>
    %c0_14 = arith.constant 0 : index
    %c0_15 = arith.constant 0 : index
    %32 = vector.load %arg4[%c0_14, %c0_15] : memref<8x128xf32, #tpu.memory_space<vmem>>, vector<8x128xf32>
    tpu.vector_store %arg4[%c0_14, %c0_15], %31 {strides = array<i32>} : memref<8x128xf32, #tpu.memory_space<vmem>>, vector<8x128xf32>,
    %c0_16 = arith.constant 0 : index
    %c0_17 = arith.constant 0 : index
    %33 = vector.load %arg5[%c0_16, %c0_17] : memref<8x128xf32, #tpu.memory_space<vmem>>, vector<8x128xf32>
    tpu.vector_store %arg5[%c0_16, %c0_17], %29 {strides = array<i32>} : memref<8x128xf32, #tpu.memory_space<vmem>>, vector<8x128xf32>,
    return
  }
  func.func @transform_0(%arg0: i32) -> (i32, i32) {
    %c0_i32 = arith.constant 0 : i32
    %c0_i32_0 = arith.constant 0 : i32
    return %arg0, %c0_i32 : i32, i32
  }
  func.func @transform_1(%arg0: i32) -> (i32, i32) {
    %c0_i32 = arith.constant 0 : i32
    %c0_i32_0 = arith.constant 0 : i32
    %c0_i32_1 = arith.constant 0 : i32
    return %c0_i32, %c0_i32_0 : i32, i32
  }
  func.func @transform_2(%arg0: i32) -> (i32, i32) {
    %c0_i32 = arith.constant 0 : i32
    %c0_i32_0 = arith.constant 0 : i32
    %c0_i32_1 = arith.constant 0 : i32
    return %c0_i32, %c0_i32_0 : i32, i32
  }
  func.func @transform_3(%arg0: i32) -> (i32, i32) {
    %c0_i32 = arith.constant 0 : i32
    %c0_i32_0 = arith.constant 0 : i32
    return %arg0, %c0_i32 : i32, i32
  }
  func.func @transform_4(%arg0: i32) -> (i32, i32) {
    %c0_i32 = arith.constant 0 : i32
    %c0_i32_0 = arith.constant 0 : i32
    return %arg0, %c0_i32 : i32, i32
  }
}

</mosaic_0001>

<llo_original>
// kernel: tpu_custom_call.1
$region0: #{tpu_custom_call.1}
  #allocation0 [shape = 'u32[]', space=smem, size = 0x4, offset = 0x4, fixed_abs, tag = 'smem constant byte address 0x4 - core index']
  #allocation1 [shape = 'u32[144,128]{1,0:T(1,128)}', space=vmem, size = 0x12000, scoped, tag = 'internal scratch']
  %s0 = inlined_call_operand.hbm [shape: f32[32,128], index: 0, kind: input, shape index: {}]
  %s1 = inlined_call_operand.hbm [shape: bf16[128,128], index: 1, kind: input, shape index: {}]
  %s2 = inlined_call_operand.vmem [shape: f32[1,128], index: 2, kind: input, shape index: {}]
  %s3 = inlined_call_operand.hbm [shape: f32[32,128], index: 3, kind: output, shape index: {0}]
  %s4 = inlined_call_operand.hbm [shape: f32[32,128], index: 4, kind: output, shape index: {1}]
  %5 = xla_tuple %s3, %s4
  %s6 = sld [smem:[#allocation0]]
  $region61: #{tpu_custom_call.1} parent=0
    _
  %s8 = ssub.s32 1, %s6
  %s9 = scalar_select 0, %s8, %s6
  $region1: #{tpu_custom_call.1} parent=0
    #allocation2 [shape = 'u8[8192]{0}', space=vmem, size = 0x2000, scoped, tag = 'input window, operand 0']
    #allocation3 [shape = 's32[2]{0}', space=sflag, size = 0x8, scoped, tag = 'scoped memory for tpu_custom_call.1']
    #allocation4 [shape = 's32[2]{0}', space=sflag, size = 0x8, scoped, tag = 'scoped memory for tpu_custom_call.1']
    #allocation5 [shape = 'u8[32768]{0}', space=vmem, size = 0x8000, scoped, tag = 'input window, operand 1, single buffered']
    #allocation6 [shape = 's32[1]{0}', space=sflag, size = 0x4, scoped, tag = 'scoped memory for tpu_custom_call.1']
    #allocation7 [shape = 'u8[8192]{0}', space=vmem, size = 0x2000, scoped, tag = 'output window, operand 0']
    #allocation8 [shape = 'u8[8192]{0}', space=vmem, size = 0x2000, scoped, tag = 'output window, operand 1']
    #allocation9 [shape = 's32[2]{0}', space=sflag, size = 0x8, scoped, tag = 'scoped memory for tpu_custom_call.1']
    %10 = vsyncpa [#allocation3], 0
    %s11 = scalar_lea.sflag [#allocation3], 1
    %12 = vsyncpa %s11, 0
    %13 = vsyncpa [#allocation6], 0
    %14 = vsyncpa [#allocation4], 0
    %s15 = scalar_lea.sflag [#allocation4], 1
    %16 = vsyncpa %s15, 0
    %17 = vsyncpa [#allocation9], 0
    %s18 = scalar_lea.sflag [#allocation9], 1
    %19 = vsyncpa %s18, 0
    loop: start=0, step=1, limit=6
    $region2: #{tpu_custom_call.1} parent=1 // loop_pre_header
      _
    $region3: #{tpu_custom_call.1} parent=1 // loop_header
      %s21 = sphi 0, %s25
      %p22 = scmp.ge.s32.totalorder %s21, 6
      %s31 = sphi 0, %s33
      %s34 = sphi 0, %s31
      %s35 = sphi 0, %s34
      %s51 = sphi 0, %s35
      %s55 = sphi 0, %s55
      %s57 = sphi 0, %s55
      %s58 = sphi 0, %s57
      %s72 = sphi 0, %s58
      %s76 = sphi 0, %s76
      %s78 = sphi 0, %s76
      %s79 = sphi 0, %s78
      %s93 = sphi 0, %s79
      %s99 = sphi 0, %s101
      %s102 = sphi 0, %s99
      %s103 = sphi 0, %s102
      %s119 = sphi 0, %s103
      %s125 = sphi 0, %s127
      %s128 = sphi 0, %s125
      %s129 = sphi 0, %s128
      %s145 = sphi 0, %s129
    $region4: #{tpu_custom_call.1} parent=1 // loop_header_branch
      %24 = sbr.rel (%p22) target = $region8
    $region5: #{tpu_custom_call.1} parent=1 // loop_body
      %s26 = ssub.s32 %s21, 1
      %s27 = ssub.s32 %s21, 2
      %s28 = sadd.s32 %s21, 1
      %s29 = ssub.s32 %s21, %s28
      %p30 = scmp.eq.s32.totalorder %s29, 0
      %s32 = sadd.s32 %s31, 1
      %s33 = scalar_select %p30, %s31, %s32
      %p36 = pneg %p30
      %p37 = scmp.eq.s32.totalorder %s21, 3
      %p38 = por %p36, %p37
      %p39 = scmp.ne.s32.totalorder %s31, %s34
      %p40 = scmp.eq.s32.totalorder %s21, 0
      %p41 = por %p39, %p40
      %p42 = scmp.ne.s32.totalorder %s31, %s34
      %p43 = scmp.eq.s32.totalorder %s26, 3
      %p44 = por %p42, %p43
      %p45 = scmp.ne.s32.totalorder %s34, %s35
      %p46 = scmp.eq.s32.totalorder %s26, 0
      %p47 = por %p45, %p46
      %p48 = scmp.ne.s32.totalorder %s34, %s35
      %p49 = scmp.eq.s32.totalorder %s27, 3
      %p50 = por %p48, %p49
      %p52 = scmp.ne.s32.totalorder %s35, %s51
      %p53 = scmp.eq.s32.totalorder %s27, 0
      %p54 = por %p52, %p53
      %s56 = sadd.s32 %s55, 1
      %p59 = scmp.eq.s32.totalorder %s21, 3
      %p60 = scmp.ne.s32.totalorder %s55, %s57
      %p61 = scmp.eq.s32.totalorder %s21, 0
      %p62 = por %p60, %p61
      %p63 = scmp.ne.s32.totalorder %s55, %s57
      %p64 = scmp.eq.s32.totalorder %s26, 3
      %p65 = por %p63, %p64
      %p66 = scmp.ne.s32.totalorder %s57, %s58
      %p67 = scmp.eq.s32.totalorder %s26, 0
      %p68 = por %p66, %p67
      %p69 = scmp.ne.s32.totalorder %s57, %s58
      %p70 = scmp.eq.s32.totalorder %s27, 3
      %p71 = por %p69, %p70
      %p73 = scmp.ne.s32.totalorder %s58, %s72
      %p74 = scmp.eq.s32.totalorder %s27, 0
      %p75 = por %p73, %p74
      %s77 = sadd.s32 %s76, 1
      %p80 = scmp.eq.s32.totalorder %s21, 3
      %p81 = scmp.ne.s32.totalorder %s76, %s78
      %p82 = scmp.eq.s32.totalorder %s21, 0
      %p83 = por %p81, %p82
      %p84 = scmp.ne.s32.totalorder %s76, %s78
      %p85 = scmp.eq.s32.totalorder %s26, 3
      %p86 = por %p84, %p85
      %p87 = scmp.ne.s32.totalorder %s78, %s79
      %p88 = scmp.eq.s32.totalorder %s26, 0
      %p89 = por %p87, %p88
      %p90 = scmp.ne.s32.totalorder %s78, %s79
      %p91 = scmp.eq.s32.totalorder %s27, 3
      %p92 = por %p90, %p91
      %p94 = scmp.ne.s32.totalorder %s79, %s93
      %p95 = scmp.eq.s32.totalorder %s27, 0
      %p96 = por %p94, %p95
      %s97 = ssub.s32 %s21, %s28
      %p98 = scmp.eq.s32.totalorder %s97, 0
      %s100 = sadd.s32 %s99, 1
      %s101 = scalar_select %p98, %s99, %s100
      %p104 = pneg %p98
      %p105 = scmp.eq.s32.totalorder %s21, 3
      %p106 = por %p104, %p105
      %p107 = scmp.ne.s32.totalorder %s99, %s102
      %p108 = scmp.eq.s32.totalorder %s21, 0
      %p109 = por %p107, %p108
      %p110 = scmp.ne.s32.totalorder %s99, %s102
      %p111 = scmp.eq.s32.totalorder %s26, 3
      %p112 = por %p110, %p111
      %p113 = scmp.ne.s32.totalorder %s102, %s103
      %p114 = scmp.eq.s32.totalorder %s26, 0
      %p115 = por %p113, %p114
      %p116 = scmp.ne.s32.totalorder %s102, %s103
      %p117 = scmp.eq.s32.totalorder %s27, 3
      %p118 = por %p116, %p117
      %p120 = scmp.ne.s32.totalorder %s103, %s119
      %p121 = scmp.eq.s32.totalorder %s27, 0
      %p122 = por %p120, %p121
      %s123 = ssub.s32 %s21, %s28
      %p124 = scmp.eq.s32.totalorder %s123, 0
      %s126 = sadd.s32 %s125, 1
      %s127 = scalar_select %p124, %s125, %s126
      %p130 = pneg %p124
      %p131 = scmp.eq.s32.totalorder %s21, 3
      %p132 = por %p130, %p131
      %p133 = scmp.ne.s32.totalorder %s125, %s128
      %p134 = scmp.eq.s32.totalorder %s21, 0
      %p135 = por %p133, %p134
      %p136 = scmp.ne.s32.totalorder %s125, %s128
      %p137 = scmp.eq.s32.totalorder %s26, 3
      %p138 = por %p136, %p137
      %p139 = scmp.ne.s32.totalorder %s128, %s129
      %p140 = scmp.eq.s32.totalorder %s26, 0
      %p141 = por %p139, %p140
      %p142 = scmp.ne.s32.totalorder %s128, %s129
      %p143 = scmp.eq.s32.totalorder %s27, 3
      %p144 = por %p142, %p143
      %p146 = scmp.ne.s32.totalorder %s129, %s145
      %p147 = scmp.eq.s32.totalorder %s27, 0
      %p148 = por %p146, %p147
      %p149 = scmp.le.s32.totalorder 1, %s21
      %p150 = scmp.lt.s32.totalorder %s21, 5
      %p151 = pnand %p149, %p150
      %p152 = pneg %p151
      // Predicated region
      $region9: #{tpu_custom_call.1} parent=5 // pred_check
        _
      $region10: #{tpu_custom_call.1} parent=5 // pred_check_branch
        %154 = sbr.rel (%p151) target = $region12
      $region11: #{tpu_custom_call.1} parent=5 // pred_region
        %s155 = ssub.s32 %s21, 1
        // Predicated region
        $region13: #{tpu_custom_call.1} parent=11 // pred_check
          %p156 = pneg %p68
        $region14: #{tpu_custom_call.1} parent=11 // pred_check_branch
          %158 = sbr.rel (%p156) target = $region16
        $region15: #{tpu_custom_call.1} parent=11 // pred_region
          %s160 = ssub.s32 1024, 1024
          %161 = vsyncadd [#allocation6], %s160
          %s162 = sshll.u32 [#allocation5], 4
          %s163 = int_to_ptr.vmem [resolvable:$true] %s162
          %168 = dma.hbm_to_vmem [thread:$0]  %s1, 1024, %s163, [#allocation6], 64, 64, 4
        $region16: #{tpu_custom_call.1} parent=11 // pred_fallthru
          _
        // Predicated region
        $region17: #{tpu_custom_call.1} parent=11 // pred_check
          %p169 = pneg %p89
        $region18: #{tpu_custom_call.1} parent=11 // pred_check_branch
          %171 = sbr.rel (%p169) target = $region20
        $region19: #{tpu_custom_call.1} parent=11 // pred_region
          _
        $region20: #{tpu_custom_call.1} parent=11 // pred_fallthru
          _
      $region12: #{tpu_custom_call.1} parent=5 // pred_fallthru
        _
      %p172 = scmp.lt.s32.totalorder %s21, 4
      // Predicated region
      $region21: #{tpu_custom_call.1} parent=5 // pred_check
        %p173 = pneg %p172
      $region22: #{tpu_custom_call.1} parent=5 // pred_check_branch
        %175 = sbr.rel (%p173) target = $region24
      $region23: #{tpu_custom_call.1} parent=5 // pred_region
        // Predicated region
        $region25: #{tpu_custom_call.1} parent=23 // pred_check
          %p176 = pneg %p41
        $region26: #{tpu_custom_call.1} parent=23 // pred_check_branch
          %178 = sbr.rel (%p176) target = $region28
        $region27: #{tpu_custom_call.1} parent=23 // pred_region
          %s179 = sand.u32 %s31, 1
          %s180 = scalar_lea.sflag [#allocation3], %s179
          %s181 = sand.u32 %s31, 1
          %s182 = smul.addr %s181, 8
          %s183 = scalar_lea.vmem [#allocation2], %s182
          %s185 = ssub.s32 128, 128
          %186 = vsyncadd %s180, %s185
          %s187 = smul.addr %s21, 128
          %s188 = scalar_lea.hbm %s0, %s187
          %s190 = sshll.u32 %s183, 4
          %s191 = int_to_ptr.vmem [resolvable:$true] %s190
          %193 = dma.hbm_to_vmem [thread:$0]  %s188, 128, %s191, %s180
        $region28: #{tpu_custom_call.1} parent=23 // pred_fallthru
          _
      $region24: #{tpu_custom_call.1} parent=5 // pred_fallthru
        _
      %p194 = scmp.le.s32.totalorder 1, %s21
      %p195 = scmp.lt.s32.totalorder %s21, 5
      %p196 = pnand %p194, %p195
      %p197 = pneg %p196
      // Predicated region
      $region29: #{tpu_custom_call.1} parent=5 // pred_check
        _
      $region30: #{tpu_custom_call.1} parent=5 // pred_check_branch
        %199 = sbr.rel (%p196) target = $region32
      $region31: #{tpu_custom_call.1} parent=5 // pred_region
        %s200 = ssub.s32 %s21, 1
        %s201 = sand.u32 %s34, 1
        %s202 = scalar_lea.sflag [#allocation3], %s201
        %s203 = sand.u32 %s34, 1
        %s204 = smul.addr %s203, 8
        %s205 = scalar_lea.vmem [#allocation2], %s204
        // Predicated region
        $region33: #{tpu_custom_call.1} parent=31 // pred_check
          %p206 = pneg %p47
        $region34: #{tpu_custom_call.1} parent=31 // pred_check_branch
          %208 = sbr.rel (%p206) target = $region36
        $region35: #{tpu_custom_call.1} parent=31 // pred_region
          %209 = dma.done %s202, 128
        $region36: #{tpu_custom_call.1} parent=31 // pred_fallthru
          _
        // Predicated region
        $region37: #{tpu_custom_call.1} parent=31 // pred_check
          %p210 = pneg %p68
        $region38: #{tpu_custom_call.1} parent=31 // pred_check_branch
          %212 = sbr.rel (%p210) target = $region40
        $region39: #{tpu_custom_call.1} parent=31 // pred_region
          %213 = dma.done [#allocation6], 1024
        $region40: #{tpu_custom_call.1} parent=31 // pred_fallthru
          _
        %s214 = sand.u32 %s34, 1
        %s215 = scalar_lea.sflag [#allocation3], %s214
        %s216 = sand.u32 %s34, 1
        %s217 = smul.addr %s216, 8
        %s218 = scalar_lea.vmem [#allocation2], %s217
        %p219 = pneg %p47
        %p220 = pneg %p44
        %p221 = pneg %p68
        %p222 = pneg %p65
        %p223 = pneg %p89
        %p224 = pneg %p86
        %p225 = pneg %p115
        %p226 = pneg %p112
        %s227 = sand.u32 %s102, 1
        %s228 = scalar_lea.sflag [#allocation4], %s227
        %s229 = sand.u32 %s102, 1
        %s230 = smul.addr %s229, 8
        %s231 = scalar_lea.vmem [#allocation7], %s230
        %p232 = pneg %p141
        %p233 = pneg %p138
        %s234 = sand.u32 %s128, 1
        %s235 = scalar_lea.sflag [#allocation9], %s234
        %s236 = sand.u32 %s128, 1
        %s237 = smul.addr %s236, 8
        %s238 = scalar_lea.vmem [#allocation8], %s237
        %v240 = vld [vmem:[%s205] sm:$0xff]
        %v241 = vpack.c.bf16 %v240, %v240
        %v242 = vld [vmem:[#allocation5] sm:$0xf]
        %v243 = vld [vmem:[#allocation5 + $0x4] sm:$0xf]
        %v244 = vld [vmem:[#allocation5 + $0x8] sm:$0xf]
        %v245 = vld [vmem:[#allocation5 + $0xc] sm:$0xf]
        %v246 = vld [vmem:[#allocation5 + $0x10] sm:$0xf]
        %v247 = vld [vmem:[#allocation5 + $0x14] sm:$0xf]
        %v248 = vld [vmem:[#allocation5 + $0x18] sm:$0xf]
        %v249 = vld [vmem:[#allocation5 + $0x1c] sm:$0xf]
        %v250 = vld [vmem:[#allocation5 + $0x20] sm:$0xf]
        %v251 = vld [vmem:[#allocation5 + $0x24] sm:$0xf]
        %v252 = vld [vmem:[#allocation5 + $0x28] sm:$0xf]
        %v253 = vld [vmem:[#allocation5 + $0x2c] sm:$0xf]
        %v254 = vld [vmem:[#allocation5 + $0x30] sm:$0xf]
        %v255 = vld [vmem:[#allocation5 + $0x34] sm:$0xf]
        %v256 = vld [vmem:[#allocation5 + $0x38] sm:$0xf]
        %v257 = vld [vmem:[#allocation5 + $0x3c] sm:$0xf]
        %v274 = vunpack.c.l.b16 %v242
        %v275 = vunpack.c.l.b16 %v243
        %v276 = vunpack.c.l.b16 %v244
        %v277 = vunpack.c.l.b16 %v245
        %v278 = vunpack.c.l.b16 %v246
        %v279 = vunpack.c.l.b16 %v247
        %v280 = vunpack.c.l.b16 %v248
        %v281 = vunpack.c.l.b16 %v249
        %v282 = vunpack.c.l.b16 %v250
        %v283 = vunpack.c.l.b16 %v251
        %v284 = vunpack.c.l.b16 %v252
        %v285 = vunpack.c.l.b16 %v253
        %v286 = vunpack.c.l.b16 %v254
        %v287 = vunpack.c.l.b16 %v255
        %v288 = vunpack.c.l.b16 %v256
        %v289 = vunpack.c.l.b16 %v257
        %v290 = vpack.c.b16 %v275, %v274
        %v291 = vpack.c.b16 %v277, %v276
        %v292 = vpack.c.b16 %v279, %v278
        %v293 = vpack.c.b16 %v281, %v280
        %v294 = vpack.c.b16 %v283, %v282
        %v295 = vpack.c.b16 %v285, %v284
        %v296 = vpack.c.b16 %v287, %v286
        %v297 = vpack.c.b16 %v289, %v288
        %306 = vmatprep.subr.bf16.mxu0 0
        %307 = vmatpush1.bf16.xpose.msra.mxu0 %v290
        %308 = vmatprep.subr.bf16.mxu0 0
        %309 = vmatpush1.bf16.xpose.msra.mxu0 %v291
        %310 = vmatprep.subr.bf16.mxu0 0
        %311 = vmatpush1.bf16.xpose.msra.mxu0 %v292
        %312 = vmatprep.subr.bf16.mxu0 0
        %313 = vmatpush1.bf16.xpose.msra.mxu0 %v293
        %314 = vmatprep.subr.bf16.mxu0 0
        %315 = vmatpush1.bf16.xpose.msra.mxu0 %v294
        %316 = vmatprep.subr.bf16.mxu0 0
        %317 = vmatpush1.bf16.xpose.msra.mxu0 %v295
        %318 = vmatprep.subr.bf16.mxu0 0
        %319 = vmatpush1.bf16.xpose.msra.mxu0 %v296
        %320 = vmatprep.subr.bf16.mxu0 0
        %321 = vmatpush1.bf16.xpose.msra.mxu0 %v297
        %322 = vmatprep.subr.bf16.mxu0 0
        %323 = vmatpush1.bf16.xpose.msra.mxu0 0
        %324 = vmatprep.subr.bf16.mxu0 0
        %325 = vmatpush1.bf16.xpose.msra.mxu0 0
        %326 = vmatprep.subr.bf16.mxu0 0
        %327 = vmatpush1.bf16.xpose.msra.mxu0 0
        %328 = vmatprep.subr.bf16.mxu0 0
        %329 = vmatpush1.bf16.xpose.msra.mxu0 0
        %330 = vmatprep.subr.bf16.mxu0 0
        %331 = vmatpush1.bf16.xpose.msra.mxu0 0
        %332 = vmatprep.subr.bf16.mxu0 0
        %333 = vmatpush1.bf16.xpose.msra.mxu0 0
        %334 = vmatprep.subr.bf16.mxu0 0
        %335 = vmatpush1.bf16.xpose.msra.mxu0 0
        %336 = vmatprep.subr.bf16.mxu0 0
        %337 = vmatpush1.bf16.xpose.msra.mxu0 0
        %338 = vmatprep.mubr.bf16.mxu0 0
        %339 = vmatmul.mubr.bf16.gmra.mrb[0].mxu0 %v241
        %v340 = vpop.f32.mrb[0].mxu0
        %v341 = vadd.f32 0.0, %v340
        %v342 = vpop.f32.mrb[0].mxu0
        %v343 = vpop.f32.mrb[0].mxu0
        %v344 = vpop.f32.mrb[0].mxu0
        %345 = vdwg.mxu0
        %346 = vmax.xlane.f32.xlu0 %v341
        %v347 = vpop.xlane.xlu0 %346
        %v348 = vsub.f32 %v341, %v347
        %v349 = vmul.f32 %v348, 1.442695
        %v350 = vpow.pop %v349
        %v351 = vld [vmem:[%s2] sm:$0x1]
        %v353 = vlaneseq
        %v354 = vshrl.u32 %v353, 7
        %v355 = vsub.s32 0, %v354
        %v356 = vrot.slane %v351, %v355
        %v358 = vmul.f32 %v350, %v356
        %359 = vadd.xlane.f32.xlu0 %v358
        %v360 = vpop.xlane.xlu0 %359
        %v361 = vrcp.pop %v360
        %v362 = vmul.f32 1.0, %v361
        %v363 = vmul.f32 %v358, %v362
        %vm364 = vcmp.gt.f32.partialorder %v363, 0.0025
        %v365 = vsel %vm364, %v363, 0.0
        %366 = vadd.xlane.f32.xlu0 %v365
        %v367 = vpop.xlane.xlu0 %366
        %v368 = vmax.f32 %v367, 1e-12
        %v369 = vrcp.pop %v368
        %v370 = vmul.f32 1.0, %v369
        %v371 = vmul.f32 %v365, %v370
        %v372 = vpack.c.bf16 %v371, %v371
        %373 = vmatprep.subr.bf16.mxu0 0
        %374 = vmatpush1.bf16.msra.mxu0 %v290
        %375 = vmatprep.subr.bf16.mxu0 0
        %376 = vmatpush1.bf16.msra.mxu0 %v291
        %377 = vmatprep.subr.bf16.mxu0 0
        %378 = vmatpush1.bf16.msra.mxu0 %v292
        %379 = vmatprep.subr.bf16.mxu0 0
        %380 = vmatpush1.bf16.msra.mxu0 %v293
        %381 = vmatprep.subr.bf16.mxu0 0
        %382 = vmatpush1.bf16.msra.mxu0 %v294
        %383 = vmatprep.subr.bf16.mxu0 0
        %384 = vmatpush1.bf16.msra.mxu0 %v295
        %385 = vmatprep.subr.bf16.mxu0 0
        %386 = vmatpush1.bf16.msra.mxu0 %v296
        %387 = vmatprep.subr.bf16.mxu0 0
        %388 = vmatpush1.bf16.msra.mxu0 %v297
        %389 = vmatprep.subr.bf16.mxu0 0
        %390 = vmatpush1.bf16.msra.mxu0 0
        %391 = vmatprep.subr.bf16.mxu0 0
        %392 = vmatpush1.bf16.msra.mxu0 0
        %393 = vmatprep.subr.bf16.mxu0 0
        %394 = vmatpush1.bf16.msra.mxu0 0
        %395 = vmatprep.subr.bf16.mxu0 0
        %396 = vmatpush1.bf16.msra.mxu0 0
        %397 = vmatprep.subr.bf16.mxu0 0
        %398 = vmatpush1.bf16.msra.mxu0 0
        %399 = vmatprep.subr.bf16.mxu0 0
        %400 = vmatpush1.bf16.msra.mxu0 0
        %401 = vmatprep.subr.bf16.mxu0 0
        %402 = vmatpush1.bf16.msra.mxu0 0
        %403 = vmatprep.subr.bf16.mxu0 0
        %404 = vmatpush1.bf16.msra.mxu0 0
        %405 = vmatprep.mubr.bf16.mxu0 0
        %406 = vmatmul.mubr.bf16.gmra.mrb[0].mxu0 %v372
        %v407 = vpop.f32.mrb[0].mxu0
        %v408 = vadd.f32 0.0, %v407
        %v409 = vpop.f32.mrb[0].mxu0
        %v410 = vpop.f32.mrb[0].mxu0
        %v411 = vpop.f32.mrb[0].mxu0
        %412 = vdwg.mxu0
        %413 = vst [vmem:[%s231] sm:$0xff] %v408
        %414 = vst [vmem:[%s238] sm:$0xff] %v371
        %s415 = sand.u32 %s102, 1
        %s416 = scalar_lea.sflag [#allocation4], %s415
        %s417 = sand.u32 %s102, 1
        %s418 = smul.addr %s417, 8
        %s419 = scalar_lea.vmem [#allocation7], %s418
        %s420 = sand.u32 %s128, 1
        %s421 = scalar_lea.sflag [#allocation9], %s420
        %s422 = sand.u32 %s128, 1
        %s423 = smul.addr %s422, 8
        %s424 = scalar_lea.vmem [#allocation8], %s423
        // Predicated region
        $region41: #{tpu_custom_call.1} parent=31 // pred_check
          %p425 = pneg %p112
        $region42: #{tpu_custom_call.1} parent=31 // pred_check_branch
          %427 = sbr.rel (%p425) target = $region44
        $region43: #{tpu_custom_call.1} parent=31 // pred_region
          %s429 = ssub.s32 128, 128
          %430 = vsyncadd %s416, %s429
          %s431 = smul.addr %s26, 128
          %s432 = scalar_lea.hbm %s3, %s431
          %s434 = sshll.u32 %s419, 4
          %s435 = int_to_ptr.vmem [resolvable:$true] %s434
          %437 = dma.vmem_to_hbm [thread:$0]  %s435, 128, %s432, %s416
        $region44: #{tpu_custom_call.1} parent=31 // pred_fallthru
          _
        // Predicated region
        $region45: #{tpu_custom_call.1} parent=31 // pred_check
          %p438 = pneg %p138
        $region46: #{tpu_custom_call.1} parent=31 // pred_check_branch
          %440 = sbr.rel (%p438) target = $region48
        $region47: #{tpu_custom_call.1} parent=31 // pred_region
          %s442 = ssub.s32 128, 128
          %443 = vsyncadd %s421, %s442
          %s444 = smul.addr %s26, 128
          %s445 = scalar_lea.hbm %s4, %s444
          %s447 = sshll.u32 %s424, 4
          %s448 = int_to_ptr.vmem [resolvable:$true] %s447
          %450 = dma.vmem_to_hbm [thread:$0]  %s448, 128, %s445, %s421
        $region48: #{tpu_custom_call.1} parent=31 // pred_fallthru
          _
      $region32: #{tpu_custom_call.1} parent=5 // pred_fallthru
        _
      %p451 = scmp.le.s32.totalorder 2, %s21
      // Predicated region
      $region49: #{tpu_custom_call.1} parent=5 // pred_check
        %p452 = pneg %p451
      $region50: #{tpu_custom_call.1} parent=5 // pred_check_branch
        %454 = sbr.rel (%p452) target = $region52
      $region51: #{tpu_custom_call.1} parent=5 // pred_region
        %s455 = ssub.s32 %s21, 2
        // Predicated region
        $region53: #{tpu_custom_call.1} parent=51 // pred_check
          %p456 = pneg %p118
        $region54: #{tpu_custom_call.1} parent=51 // pred_check_branch
          %458 = sbr.rel (%p456) target = $region56
        $region55: #{tpu_custom_call.1} parent=51 // pred_region
          %s459 = sand.u32 %s103, 1
          %s460 = scalar_lea.sflag [#allocation4], %s459
          %s461 = sand.u32 %s103, 1
          %s462 = smul.addr %s461, 8
          %s463 = scalar_lea.vmem [#allocation7], %s462
          %464 = dma.done %s460, 128
        $region56: #{tpu_custom_call.1} parent=51 // pred_fallthru
          _
        // Predicated region
        $region57: #{tpu_custom_call.1} parent=51 // pred_check
          %p465 = pneg %p144
        $region58: #{tpu_custom_call.1} parent=51 // pred_check_branch
          %467 = sbr.rel (%p465) target = $region60
        $region59: #{tpu_custom_call.1} parent=51 // pred_region
          %s468 = sand.u32 %s129, 1
          %s469 = scalar_lea.sflag [#allocation9], %s468
          %s470 = sand.u32 %s129, 1
          %s471 = smul.addr %s470, 8
          %s472 = scalar_lea.vmem [#allocation8], %s471
          %473 = dma.done %s469, 128
        $region60: #{tpu_custom_call.1} parent=51 // pred_fallthru
          _
      $region52: #{tpu_custom_call.1} parent=5 // pred_fallthru
        _
    $region6: #{tpu_custom_call.1} parent=1 // loop_footer
      %s25 = sadd.s32 1, %s21
    $region7: #{tpu_custom_call.1} parent=1 // loop_footer_branch
      %20 = sbr.rel target = $region3
    $region8: #{tpu_custom_call.1} parent=1 // loop_exit
      _
    %474 = vsyncpa [#allocation3], 1
    %s475 = scalar_lea.sflag [#allocation3], 1
    %476 = vsyncpa %s475, 1
    %477 = vsyncpa [#allocation6], 1
    %478 = vsyncpa [#allocation4], 1
    %s479 = scalar_lea.sflag [#allocation4], 1
    %480 = vsyncpa %s479, 1
    %481 = vsyncpa [#allocation9], 1
    %s482 = scalar_lea.sflag [#allocation9], 1
    %483 = vsyncpa %s482, 1

</llo_original>
